<compile_context>
chip_gen: v7x
topology: tpu7x:2x2x1
jax: 0.10.0
libtpu: 0.0.40
codegen_flags: <defaults>
</compile_context>

<pallas_src>
import jax
import jax.numpy as jnp
import numpy as np
from jax.experimental import pallas as pl
from jax.experimental.pallas import tpu as pltpu

# ----------------------------- config (NKATLoRAConfig defaults) ----------------
RANK = 16
ALPHA = 32.0
KOLMOGOROV_RANK = 8
ARNOLD_COMPLEXITY = 0.1
NON_COMMUTATIVE_STRENGTH = 0.2

IN_FEATURES = KOLMOGOROV_RANK          # required by the module's broadcasting
OUT_FEATURES = 32
BATCH = KOLMOGOROV_RANK                # module-exact shape for the (B,K)+(B,) broadcast


def _round_up(n, m):
    return ((n + m - 1) // m) * m


# ----------------------------- Pallas kernel -----------------------------------
def _lora_nkat_kernel(x_ref, w_ref, out_ref):
    # Entire NKAT-LoRA forward folded into a single weight W:
    #   Arnold map + Kolmogorov projection + LoRA A/B + alpha/rank scale.
    # TODO(synk): commutator-trace term constant-folded away (bit-exactly zero).
    w = w_ref[...]
    x = x_ref[...].astype(w.dtype)                        # bf16 fast path if weights are bf16
    out_ref[...] = jnp.dot(x, w, preferred_element_type=jnp.float32).astype(out_ref.dtype)


def _fold_weight(arnold, basis, lora_a, lora_b):
    """W = (arnold @ basis.T) @ ((alpha/rank) * lora_A.T @ lora_B.T)  -> (D, out)."""
    w1 = jnp.dot(arnold, basis.T, preferred_element_type=jnp.float32)              # (D, K)
    w2 = jnp.dot(lora_a.T, lora_b.T, preferred_element_type=jnp.float32) * (ALPHA / RANK)  # (K, out)
    return jnp.dot(w1, w2, preferred_element_type=jnp.float32)                     # (D, out)


def lora_layer_forward(x, arnold, basis, lora_a, lora_b, *,
                       weight_dtype=jnp.float32, block_rows=2048,
                       min_pallas_batch=64, force_pallas=False,
                       return_padded=False):
    """x: (batch, in_features) f32.  Returns (batch, out_features) f32."""
    batch, d = x.shape
    out_features = lora_b.shape[0]

    # ---- build-time constant folding (one weight for the whole forward) --------
    w = _fold_weight(arnold, basis, lora_a, lora_b)                                 # (D, out)

    # Tiny problems: pallas_call launch + DMA setup dominate; plain XLA dot wins.
    if batch < min_pallas_batch and not force_pallas:
        return jnp.dot(x, w, preferred_element_type=jnp.float32)

    # Zero-pad out_features to 128 lanes -> lane-dense (unmasked) output stores.
    # Exact zeros, numerics unchanged.
    outp = _round_up(out_features, 128)
    wp = jnp.zeros((d, outp), jnp.float32).at[:, :out_features].set(w).astype(weight_dtype)

    # ---- batch tiling ----------------------------------------------------------
    padded_batch = _round_up(batch, 8)
    tb = min(block_rows, padded_batch)
    # v7x has 2 TensorCores: keep at least 2 "parallel" grid steps when possible.
    if tb >= padded_batch and padded_batch >= 16:
        tb = _round_up((padded_batch + 1) // 2, 8)
    padded_batch = _round_up(padded_batch, tb)
    if padded_batch != batch:
        x = jnp.pad(x, ((0, padded_batch - batch), (0, 0)))

    grid = (padded_batch // tb,)

    # ---- VMEM budget / compiler params ------------------------------------------
    w_bytes = d * outp * jnp.dtype(weight_dtype).itemsize
    tile_bytes = tb * d * x.dtype.itemsize + tb * outp * 4
    vmem_need = 2 * tile_bytes + 2 * w_bytes                 # double-buffered tiles + weight
    vmem_limit = None
    if vmem_need > 12 * 1024 * 1024:                         # only raise past v5e's 16 MiB default
        vmem_limit = int(min(48 * 1024 * 1024, 2 * vmem_need))

    cost = pl.CostEstimate(
        flops=2 * padded_batch * d * outp,
        transcendentals=0,
        bytes_accessed=(padded_batch * d * x.dtype.itemsize      # x read
                        + padded_batch * outp * 4                # output write (dominant)
                        + w_bytes))                              # weight read

    out = pl.pallas_call(
        _lora_nkat_kernel,
        out_shape=jax.ShapeDtypeStruct((padded_batch, outp), jnp.float32),
        grid=grid,
        in_specs=[
            pl.BlockSpec((tb, d), lambda i: (i, 0)),      # x rows, tiled over the grid
            pl.BlockSpec((d, outp), lambda i: (0, 0)),    # fully-folded weight (broadcast)
        ],
        out_specs=pl.BlockSpec((tb, outp), lambda i: (i, 0)),
        compiler_params=pltpu.CompilerParams(
            dimension_semantics=("parallel",),
            vmem_limit_bytes=vmem_limit),
        cost_estimate=cost,
    )(x, wp)

    if return_padded:
        return out                                        # fused consumers can slice/reuse
    return out[:batch, :out_features]


# ----------------------------- deterministic constants / parameters -------------
def build_constants(dim):
    # Kolmogorov basis: (K, D)
    ls_g = jnp.linspace(-3.0, 3.0, dim)
    ls_p = jnp.linspace(0.0, 1.0, dim)
    gaussian = jnp.exp(-0.5 * ls_g ** 2)
    rows = [gaussian * jnp.sin(2.0 * np.pi * i * ls_p) for i in range(KOLMOGOROV_RANK)]
    basis = jnp.stack(rows).astype(jnp.float32)

    # Arnold matrix: eye + off-diag complexity * sin(2*pi*(i+j)/dim)
    i_idx = jnp.arange(dim)[:, None]
    j_idx = jnp.arange(dim)[None, :]
    off = ARNOLD_COMPLEXITY * jnp.sin(2.0 * np.pi * (i_idx + j_idx) / dim)
    arnold = jnp.where(i_idx == j_idx, 1.0, off).astype(jnp.float32)
    return arnold, basis


# ----------------------------- plain-JAX reference (mirrors PyTorch ops) --------
def reference_forward(x, arnold, basis, lora_a, lora_b):
    transformed = x @ arnold                                                  # (B, D)
    arnold_tf = jnp.squeeze(transformed[:, None, :] @ basis.T, axis=-2)       # (B, K)
    comm = (x[..., :, None] @ arnold_tf[..., None, :]
            - arnold_tf[..., :, None] @ x[..., None, :])                      # (B, D, D)
    nc = jnp.trace(comm, axis1=-2, axis2=-1)                                  # (B,) == 0 exactly
    if x.shape[0] == arnold_tf.shape[-1]:
        result = arnold_tf + NON_COMMUTATIVE_STRENGTH * nc                    # PyTorch (B,K)+(B,)
    else:
        # PyTorch's broadcast would fail here; nc is bit-exactly zero anyway.
        result = arnold_tf
    out = (result @ lora_a.T) @ lora_b.T
    return out * (ALPHA / RANK)


# ----------------------------- main ----------------------------------------------
if __name__ == "__main__":
    key = jax.random.PRNGKey(0)
    k_x, k_a, k_b, k_x2 = jax.random.split(key, 4)

    arnold, basis = build_constants(IN_FEATURES)

    # lora_B is zeros in __init__ (standard LoRA init); a non-zero "trained"
    # lora_B is also tested so the matmul path is actually exercised.
    lora_a = (0.02 * jax.random.normal(k_a, (RANK, IN_FEATURES))).astype(jnp.float32)
    lora_b_init = jnp.zeros((OUT_FEATURES, RANK), dtype=jnp.float32)
    lora_b_trained = (0.02 * jax.random.normal(k_b, (OUT_FEATURES, RANK))).astype(jnp.float32)

    # --- module-exact shapes: batch == in_features == kolmogorov_rank == 8 ------
    # (forced through the Pallas path to exercise the single-tile case)
    x = jax.random.normal(k_x, (BATCH, IN_FEATURES), dtype=jnp.float32)

    out = jax.block_until_ready(
        lora_layer_forward(x, arnold, basis, lora_a, lora_b_trained, force_pallas=True))
    ref = reference_forward(x, arnold, basis, lora_a, lora_b_trained)
    np.testing.assert_allclose(np.asarray(out), np.asarray(ref), rtol=1e-5, atol=1e-5)

    # Exact __init__ semantics (lora_B == 0 -> folded W == 0 -> output exactly zero).
    out0 = jax.block_until_ready(
        lora_layer_forward(x, arnold, basis, lora_a, lora_b_init, force_pallas=True))
    np.testing.assert_array_equal(np.asarray(out0), np.zeros_like(np.asarray(out0)))

    # --- tiled path: larger batch -> >=2 "parallel" grid steps (v7x megacore) ---
    xb = jax.random.normal(k_x2, (256, IN_FEATURES), dtype=jnp.float32)
    outb = jax.block_until_ready(
        lora_layer_forward(xb, arnold, basis, lora_a, lora_b_trained))
    refb = reference_forward(xb, arnold, basis, lora_a, lora_b_trained)
    np.testing.assert_allclose(np.asarray(outb), np.asarray(refb), rtol=1e-5, atol=1e-5)

    print("KERNEL_OK")
</pallas_src>

<mosaic_0001>
module attributes {stable_mosaic.version = 11 : i64} {
  func.func @_lora_nkat_kernel(%arg0: i32, %arg1: memref<8x8xf32, #tpu.memory_space<vmem>>, %arg2: memref<8x128xf32, #tpu.memory_space<vmem>>, %arg3: memref<8x128xf32, #tpu.memory_space<vmem>>) attributes {dimension_semantics = [#tpu.dimension_semantics<parallel>], iteration_bounds = array<i64: 1>, scalar_prefetch = 0 : i64, scratch_operands = 0 : i64, tpu.core_type = #tpu.core_type<tc>, window_params = [{transform_indices = @transform_0, window_bounds = array<i64: 8, 8>}, {pipeline_mode = #tpu.pipeline_mode<synchronous>, transform_indices = @transform_1, window_bounds = array<i64: 8, 128>}, {transform_indices = @transform_2, window_bounds = array<i64: 8, 128>}]} {
    %c0 = arith.constant 0 : index
    %c0_0 = arith.constant 0 : index
    %0 = vector.load %arg2[%c0, %c0_0] : memref<8x128xf32, #tpu.memory_space<vmem>>, vector<8x128xf32>
    %c0_1 = arith.constant 0 : index
    %c0_2 = arith.constant 0 : index
    %1 = vector.load %arg1[%c0_1, %c0_2] : memref<8x8xf32, #tpu.memory_space<vmem>>, vector<8x8xf32>
    %cst = arith.constant dense<0.000000e+00> : vector<8x128xf32>
    %2 = tpu.matmul %1, %0, %cst {dimension_numbers = #tpu.dot_dimension_numbers<[1], [0], [0], [1], [0, 0, 1, 1], [], []>} : vector<8x8xf32>, vector<8x128xf32>, vector<8x128xf32> -> vector<8x128xf32>
    %c0_3 = arith.constant 0 : index
    %c0_4 = arith.constant 0 : index
    %3 = vector.load %arg3[%c0_3, %c0_4] : memref<8x128xf32, #tpu.memory_space<vmem>>, vector<8x128xf32>
    tpu.vector_store %arg3[%c0_3, %c0_4], %2 {strides = array<i32>} : memref<8x128xf32, #tpu.memory_space<vmem>>, vector<8x128xf32>,
    return
  }
  func.func @transform_0(%arg0: i32) -> (i32, i32) {
    %c0_i32 = arith.constant 0 : i32
    %c0_i32_0 = arith.constant 0 : i32
    return %arg0, %c0_i32 : i32, i32
  }
  func.func @transform_1(%arg0: i32) -> (i32, i32) {
    %c0_i32 = arith.constant 0 : i32
    %c0_i32_0 = arith.constant 0 : i32
    %c0_i32_1 = arith.constant 0 : i32
    return %c0_i32, %c0_i32_0 : i32, i32
  }
  func.func @transform_2(%arg0: i32) -> (i32, i32) {
    %c0_i32 = arith.constant 0 : i32
    %c0_i32_0 = arith.constant 0 : i32
    return %arg0, %c0_i32 : i32, i32
  }
}

</mosaic_0001>

<llo_original>
// kernel: tpu_custom_call.1
$region0: #{tpu_custom_call.1}
  #allocation0 [shape = 'u32[]', space=smem, size = 0x4, offset = 0x4, fixed_abs, tag = 'smem constant byte address 0x4 - core index']
  #allocation1 [shape = 'u32[144,128]{1,0:T(1,128)}', space=vmem, size = 0x12000, scoped, tag = 'internal scratch']
  %s0 = inlined_call_operand.hbm [shape: f32[8,8], index: 0, kind: input, shape index: {}]
  %s1 = inlined_call_operand.hbm [shape: f32[8,128], index: 1, kind: input, shape index: {}]
  %s2 = inlined_call_operand.hbm [shape: f32[8,128], index: 2, kind: output, shape index: {}]
  %s3 = sld [smem:[#allocation0]]
  $region26: #{tpu_custom_call.1} parent=0
    _
  %s5 = ssub.s32 1, %s3
  %s6 = scalar_select 0, %s5, %s3
  $region1: #{tpu_custom_call.1} parent=0
    #allocation2 [shape = 'u8[4096]{0}', space=vmem, size = 0x1000, scoped, tag = 'input window, operand 0, single buffered']
    #allocation3 [shape = 's32[1]{0}', space=sflag, size = 0x4, scoped, tag = 'scoped memory for tpu_custom_call.1']
    #allocation4 [shape = 's32[1]{0}', space=sflag, size = 0x4, scoped, tag = 'scoped memory for tpu_custom_call.1']
    #allocation5 [shape = 'u8[4096]{0}', space=vmem, size = 0x1000, scoped, tag = 'input window, operand 1, single buffered']
    #allocation6 [shape = 's32[1]{0}', space=sflag, size = 0x4, scoped, tag = 'scoped memory for tpu_custom_call.1']
    #allocation7 [shape = 'u8[4096]{0}', space=vmem, size = 0x1000, scoped, tag = 'output window, operand 0, single buffered']
    %7 = vsyncpa [#allocation3], 0
    %8 = vsyncpa [#allocation6], 0
    %9 = vsyncpa [#allocation4], 0
    // Predicated region
    $region2: #{tpu_custom_call.1} parent=1 // pred_check
      _
    $region3: #{tpu_custom_call.1} parent=1 // pred_check_branch
      %11 = sbr.rel (0) target = $region5
    $region4: #{tpu_custom_call.1} parent=1 // pred_region
      %s13 = ssub.s32 128, 128
      %14 = vsyncadd [#allocation3], %s13
      %s16 = sshll.u32 [#allocation2], 4
      %s17 = int_to_ptr.vmem [resolvable:$true] %s16
      %19 = dma.hbm_to_vmem [thread:$0]  %s0, 128, %s17, [#allocation3]
    $region5: #{tpu_custom_call.1} parent=1 // pred_fallthru
      _
    // Predicated region
    $region6: #{tpu_custom_call.1} parent=1 // pred_check
      _
    $region7: #{tpu_custom_call.1} parent=1 // pred_check_branch
      %21 = sbr.rel (0) target = $region9
    $region8: #{tpu_custom_call.1} parent=1 // pred_region
      %s23 = ssub.s32 128, 128
      %24 = vsyncadd [#allocation6], %s23
      %s26 = sshll.u32 [#allocation5], 4
      %s27 = int_to_ptr.vmem [resolvable:$true] %s26
      %29 = dma.hbm_to_vmem [thread:$0]  %s1, 128, %s27, [#allocation6]
    $region9: #{tpu_custom_call.1} parent=1 // pred_fallthru
      _
    // Predicated region
    $region10: #{tpu_custom_call.1} parent=1 // pred_check
      _
    $region11: #{tpu_custom_call.1} parent=1 // pred_check_branch
      %31 = sbr.rel (0) target = $region13
    $region12: #{tpu_custom_call.1} parent=1 // pred_region
      %32 = dma.done [#allocation3], 128
    $region13: #{tpu_custom_call.1} parent=1 // pred_fallthru
      _
    // Predicated region
    $region14: #{tpu_custom_call.1} parent=1 // pred_check
      _
    $region15: #{tpu_custom_call.1} parent=1 // pred_check_branch
      %34 = sbr.rel (0) target = $region17
    $region16: #{tpu_custom_call.1} parent=1 // pred_region
      %35 = dma.done [#allocation6], 128
    $region17: #{tpu_custom_call.1} parent=1 // pred_fallthru
      _
    %v36 = vld [vmem:[#allocation5] sm:$0xff]
    %v37 = vld [vmem:[#allocation2] sm:$0xff]
    %vm38 = vcmask 64512
    %v40 = vsel %vm38, %v37, 0
    %42 = vmatprep.subr.mxu0 0.0
    %43 = vmatpush1.msra.mxu0 %v36
    %44 = vmatprep.subr.mxu0 0.0
    %45 = vmatpush1.msra.mxu0 0.0
    %46 = vmatprep.subr.mxu0 0.0
    %47 = vmatpush1.msra.mxu0 0.0
    %48 = vmatprep.subr.mxu0 0.0
    %49 = vmatpush1.msra.mxu0 0.0
    %50 = vmatprep.subr.mxu0 0.0
    %51 = vmatpush1.msra.mxu0 0.0
    %52 = vmatprep.subr.mxu0 0.0
    %53 = vmatpush1.msra.mxu0 0.0
    %54 = vmatprep.subr.mxu0 0.0
    %55 = vmatpush1.msra.mxu0 0.0
    %56 = vmatprep.subr.mxu0 0.0
    %57 = vmatpush1.msra.mxu0 0.0
    %58 = vmatprep.subr.mxu0 0.0
    %59 = vmatpush1.msra.mxu0 0.0
    %60 = vmatprep.subr.mxu0 0.0
    %61 = vmatpush1.msra.mxu0 0.0
    %62 = vmatprep.subr.mxu0 0.0
    %63 = vmatpush1.msra.mxu0 0.0
    %64 = vmatprep.subr.mxu0 0.0
    %65 = vmatpush1.msra.mxu0 0.0
    %66 = vmatprep.subr.mxu0 0.0
    %67 = vmatpush1.msra.mxu0 0.0
    %68 = vmatprep.subr.mxu0 0.0
    %69 = vmatpush1.msra.mxu0 0.0
    %70 = vmatprep.subr.mxu0 0.0
    %71 = vmatpush1.msra.mxu0 0.0
    %72 = vmatprep.subr.mxu0 0.0
    %73 = vmatpush1.msra.mxu0 0.0
    %74 = vmatprep.subr.mxu0 0.0
    %75 = vmatpush1.msra.mxu0 0.0
    %76 = vmatprep.subr.mxu0 0.0
    %77 = vmatpush1.msra.mxu0 0.0
    %78 = vmatprep.subr.mxu0 0.0
    %79 = vmatpush1.msra.mxu0 0.0
    %80 = vmatprep.subr.mxu0 0.0
    %81 = vmatpush1.msra.mxu0 0.0
    %82 = vmatprep.subr.mxu0 0.0
    %83 = vmatpush1.msra.mxu0 0.0
    %84 = vmatprep.subr.mxu0 0.0
    %85 = vmatpush1.msra.mxu0 0.0
    %86 = vmatprep.subr.mxu0 0.0
    %87 = vmatpush1.msra.mxu0 0.0
    %88 = vmatprep.subr.mxu0 0.0
    %89 = vmatpush1.msra.mxu0 0.0
    %90 = vmatprep.subr.mxu0 0.0
    %91 = vmatpush1.msra.mxu0 0.0
    %92 = vmatprep.subr.mxu0 0.0
    %93 = vmatpush1.msra.mxu0 0.0
    %94 = vmatprep.subr.mxu0 0.0
    %95 = vmatpush1.msra.mxu0 0.0
    %96 = vmatprep.subr.mxu0 0.0
    %97 = vmatpush1.msra.mxu0 0.0
    %98 = vmatprep.subr.mxu0 0.0
    %99 = vmatpush1.msra.mxu0 0.0
    %100 = vmatprep.subr.mxu0 0.0
    %101 = vmatpush1.msra.mxu0 0.0
    %102 = vmatprep.subr.mxu0 0.0
    %103 = vmatpush1.msra.mxu0 0.0
    %104 = vmatprep.subr.mxu0 0.0
    %105 = vmatpush1.msra.mxu0 0.0
    %106 = vmatprep.mubr.f32.mxu0 0.0
    %107 = vmatmul.mubr.f32.gmra.mrb[0].mxu0 %v40
    %v108 = vpop.f32.mrb[0].mxu0
    %v109 = vadd.f32 0.0, %v108
    %v110 = vpop.f32.mrb[0].mxu0
    %111 = vdwg.mxu0
    %112 = vst [vmem:[#allocation7] sm:$0xff] %v109
    // Predicated region
    $region18: #{tpu_custom_call.1} parent=1 // pred_check
      _
    $region19: #{tpu_custom_call.1} parent=1 // pred_check_branch
      %114 = sbr.rel (0) target = $region21
    $region20: #{tpu_custom_call.1} parent=1 // pred_region
      %s116 = ssub.s32 128, 128
      %117 = vsyncadd [#allocation4], %s116
      %s119 = sshll.u32 [#allocation7], 4
      %s120 = int_to_ptr.vmem [resolvable:$true] %s119
      %122 = dma.vmem_to_hbm [thread:$0]  %s120, 128, %s2, [#allocation4]
    $region21: #{tpu_custom_call.1} parent=1 // pred_fallthru
      _
    // Predicated region
    $region22: #{tpu_custom_call.1} parent=1 // pred_check
      _
    $region23: #{tpu_custom_call.1} parent=1 // pred_check_branch
      %124 = sbr.rel (0) target = $region25
    $region24: #{tpu_custom_call.1} parent=1 // pred_region
      %125 = dma.done [#allocation4], 128
    $region25: #{tpu_custom_call.1} parent=1 // pred_fallthru
      _
    %126 = vsyncpa [#allocation3], 1
    %127 = vsyncpa [#allocation6], 1
    %128 = vsyncpa [#allocation4], 1

</llo_original>
